<compile_context>
chip_gen: v7x
topology: tpu7x:2x2x1
jax: 0.10.0
libtpu: 0.0.40
codegen_flags: <defaults>
</compile_context>

<pallas_src>
import jax
import jax.numpy as jnp
from jax.experimental import pallas as pl
from jax.experimental.pallas import tpu as pltpu

LANE = 128
MIB = 1024 * 1024

# Per-block byte target: 2 arrays x 2 buffers x 4 MiB = 16 MiB footprint,
# comfortably inside the explicit 32 MiB scoped-VMEM limit set below.
_TARGET_BLOCK_BYTES = 4 * MIB
_VMEM_LIMIT_BYTES = 32 * MIB


def _floor_kernel(x_ref, o_ref):
    # Elementwise floor on the VPU; the kernel is HBM-bandwidth bound.
    o_ref[...] = jnp.floor(x_ref[...])


def _choose_tile_rows(rows2, width, itemsize, sublane_mult, target_block_bytes):
    """Row-tile so blocks are ~target_block_bytes while the grid keeps enough
    (and preferably an even number of) steps for v7x's two TensorCores."""
    bytes_per_row = width * itemsize
    total_bytes = rows2 * bytes_per_row

    # Rows per block from the byte target, rounded to the sublane multiple.
    tile_r = max(sublane_mult,
                 (target_block_bytes // bytes_per_row) // sublane_mult * sublane_mult)
    tile_r = min(tile_r, rows2)

    # Megacore: force >= 2 grid steps above ~1 MiB and >= 4 above ~4 MiB,
    # preferring an even grid length so both cores stay balanced.
    min_blocks = 1
    if total_bytes > 4 * MIB:
        min_blocks = 4
    elif total_bytes > 1 * MIB:
        min_blocks = 2

    nblocks = max(pl.cdiv(rows2, tile_r), min_blocks)
    if nblocks > 1 and nblocks % 2:
        nblocks += 1

    if nblocks == 1:
        # Full-dim block: exempt from the (8,128) divisibility rule.
        return rows2
    per = pl.cdiv(rows2, nblocks)
    return min(pl.cdiv(per, sublane_mult) * sublane_mult, rows2)


def floor_pallas(x: jnp.ndarray, *, target_block_bytes: int = _TARGET_BLOCK_BYTES,
                 donate: bool = False) -> jnp.ndarray:
    """Elementwise floor computed in a Pallas TPU kernel.

    Streams the flattened array through a lane-dense 2D view with ~4 MiB
    blocks.  `donate=True` aliases the output onto the input buffer (lower
    peak HBM footprint, not lower traffic).
    """
    dtype = x.dtype
    if not jnp.issubdtype(dtype, jnp.floating):
        # torch.Tensor.floor() also rejects integer/bool tensors.
        raise TypeError(f"floor_pallas requires a floating dtype, got {dtype}")

    orig_shape = x.shape
    n = x.size
    if n == 0:
        return x

    itemsize = jnp.dtype(dtype).itemsize
    sublane_mult = {4: 8, 2: 16, 1: 32}.get(itemsize, 8)

    # Pure reshapes of a contiguous row-major array lower to bitcasts
    # (no HBM traffic), so flatten + re-widen is free.
    flat = x.reshape(-1)
    padded = (n % LANE) != 0
    if padded:
        # Rare path: pad up to the next full lane row (< 128 elements of pad).
        n_full = pl.cdiv(n, LANE) * LANE
        flat = jnp.pad(flat, (0, n_full - n))
    else:
        n_full = n

    rows = n_full // LANE

    # Widen the lane (last) dim as far as divisibility allows -> long,
    # unmasked, lane-dense stores.
    k = 1
    for cand in (32, 16, 8, 4, 2):
        if rows % cand == 0:
            k = cand
            break
    rows2 = rows // k
    width = LANE * k  # multiple of 128

    x2d = flat.reshape(rows2, width)

    tile_r = _choose_tile_rows(rows2, width, itemsize, sublane_mult,
                               target_block_bytes)
    grid = (pl.cdiv(rows2, tile_r),)

    # Only alias on the unpadded path (on the padded path the alias would
    # target the padded temporary, not the caller's buffer).
    aliases = {0: 0} if (donate and not padded) else {}

    out2d = pl.pallas_call(
        _floor_kernel,
        out_shape=jax.ShapeDtypeStruct((rows2, width), dtype),
        grid_spec=pltpu.PrefetchScalarGridSpec(
            num_scalar_prefetch=0,
            grid=grid,
            in_specs=[pl.BlockSpec((tile_r, width), lambda i: (i, 0))],
            out_specs=pl.BlockSpec((tile_r, width), lambda i: (i, 0)),
        ),
        compiler_params=pltpu.CompilerParams(
            dimension_semantics=("parallel",),
            vmem_limit_bytes=_VMEM_LIMIT_BYTES,
        ),
        cost_estimate=pl.CostEstimate(
            flops=rows2 * width,
            transcendentals=0,
            bytes_accessed=2 * rows2 * width * itemsize,
        ),
        input_output_aliases=aliases,
    )(x2d)

    if padded:
        return out2d.reshape(-1)[:n].reshape(orig_shape)
    return out2d.reshape(orig_shape)


if __name__ == "__main__":
    key = jax.random.PRNGKey(0)

    # Small NCHW input typical of where Floor is used (quantization STE).
    x = jax.random.normal(key, (2, 4, 16, 16), dtype=jnp.float32) * 3.0
    y = floor_pallas(x)
    jax.block_until_ready(y)
    y_ref = jnp.floor(x)
    assert y.shape == x.shape and y.dtype == x.dtype
    assert bool(jnp.all(y == y_ref))

    # bf16, lane-aligned path (exercises the packed-dtype sublane multiple).
    xb = (jax.random.normal(jax.random.PRNGKey(2), (2, 8, 128)) * 4.0).astype(jnp.bfloat16)
    yb = floor_pallas(xb)
    jax.block_until_ready(yb)
    assert yb.shape == xb.shape and yb.dtype == jnp.bfloat16
    assert bool(jnp.all(yb == jnp.floor(xb)))

    # Non-lane-aligned (padding) path with a tiny odd shape.
    x2 = jax.random.normal(jax.random.PRNGKey(1), (3, 5, 7), dtype=jnp.float32) * 5.0
    y2 = floor_pallas(x2)
    jax.block_until_ready(y2)
    assert y2.shape == x2.shape and bool(jnp.all(y2 == jnp.floor(x2)))

    print("KERNEL_OK")
</pallas_src>

<mosaic_0001>
module attributes {stable_mosaic.version = 11 : i64} {
  func.func @_floor_kernel(%arg0: i32, %arg1: memref<1x2048xf32, #tpu.memory_space<vmem>>, %arg2: memref<1x2048xf32, #tpu.memory_space<vmem>>) attributes {dimension_semantics = [#tpu.dimension_semantics<parallel>], iteration_bounds = array<i64: 1>, scalar_prefetch = 0 : i64, scratch_operands = 0 : i64, tpu.core_type = #tpu.core_type<tc>, window_params = [{transform_indices = @transform_0, window_bounds = array<i64: 1, 2048>}, {transform_indices = @transform_1, window_bounds = array<i64: 1, 2048>}]} {
    %c0 = arith.constant 0 : index
    %c0_0 = arith.constant 0 : index
    %0 = vector.load %arg1[%c0, %c0_0] : memref<1x2048xf32, #tpu.memory_space<vmem>>, vector<1x2048xf32>
    %1 = math.floor %0 : vector<1x2048xf32>
    %c0_1 = arith.constant 0 : index
    %c0_2 = arith.constant 0 : index
    %2 = vector.load %arg2[%c0_1, %c0_2] : memref<1x2048xf32, #tpu.memory_space<vmem>>, vector<1x2048xf32>
    tpu.vector_store %arg2[%c0_1, %c0_2], %1 {strides = array<i32>} : memref<1x2048xf32, #tpu.memory_space<vmem>>, vector<1x2048xf32>,
    return
  }
  func.func @transform_0(%arg0: i32) -> (i32, i32) {
    %c0_i32 = arith.constant 0 : i32
    %c0_i32_0 = arith.constant 0 : i32
    return %arg0, %c0_i32 : i32, i32
  }
  func.func @transform_1(%arg0: i32) -> (i32, i32) {
    %c0_i32 = arith.constant 0 : i32
    %c0_i32_0 = arith.constant 0 : i32
    return %arg0, %c0_i32 : i32, i32
  }
}

</mosaic_0001>

<llo_original>
// kernel: tpu_custom_call.1
$region0: #{tpu_custom_call.1}
  #allocation0 [shape = 'u32[]', space=smem, size = 0x4, offset = 0x4, fixed_abs, tag = 'smem constant byte address 0x4 - core index']
  #allocation1 [shape = 'u32[144,128]{1,0:T(1,128)}', space=vmem, size = 0x12000, scoped, tag = 'internal scratch']
  %s0 = inlined_call_operand.hbm [shape: f32[1,2048], index: 0, kind: input, shape index: {}]
  %s1 = inlined_call_operand.hbm [shape: f32[1,2048], index: 1, kind: output, shape index: {}]
  %s2 = sld [smem:[#allocation0]]
  $region18: #{tpu_custom_call.1} parent=0
    _
  %s4 = ssub.s32 1, %s2
  %s5 = scalar_select 0, %s4, %s2
  $region1: #{tpu_custom_call.1} parent=0
    #allocation2 [shape = 'u8[8192]{0}', space=vmem, size = 0x2000, scoped, tag = 'input window, operand 0, single buffered']
    #allocation3 [shape = 's32[1]{0}', space=sflag, size = 0x4, scoped, tag = 'scoped memory for tpu_custom_call.1']
    #allocation4 [shape = 's32[1]{0}', space=sflag, size = 0x4, scoped, tag = 'scoped memory for tpu_custom_call.1']
    #allocation5 [shape = 'u8[8192]{0}', space=vmem, size = 0x2000, scoped, tag = 'output window, operand 0, single buffered']
    %6 = vsyncpa [#allocation3], 0
    %7 = vsyncpa [#allocation4], 0
    // Predicated region
    $region2: #{tpu_custom_call.1} parent=1 // pred_check
      _
    $region3: #{tpu_custom_call.1} parent=1 // pred_check_branch
      %9 = sbr.rel (0) target = $region5
    $region4: #{tpu_custom_call.1} parent=1 // pred_region
      %s11 = ssub.s32 256, 256
      %12 = vsyncadd [#allocation3], %s11
      %s14 = sshll.u32 [#allocation2], 4
      %s15 = int_to_ptr.vmem [resolvable:$true] %s14
      %17 = dma.hbm_to_vmem [thread:$0]  %s0, 256, %s15, [#allocation3]
    $region5: #{tpu_custom_call.1} parent=1 // pred_fallthru
      _
    // Predicated region
    $region6: #{tpu_custom_call.1} parent=1 // pred_check
      _
    $region7: #{tpu_custom_call.1} parent=1 // pred_check_branch
      %19 = sbr.rel (0) target = $region9
    $region8: #{tpu_custom_call.1} parent=1 // pred_region
      %20 = dma.done [#allocation3], 256
    $region9: #{tpu_custom_call.1} parent=1 // pred_fallthru
      _
    %v21 = vld [vmem:[#allocation2] sm:$0xff]
    %v22 = vld [vmem:[#allocation2 + $0x8] sm:$0xff]
    %v23 = vfloor.f32 %v21
    %v24 = vfloor.f32 %v22
    %25 = vst [vmem:[#allocation5] sm:$0xff] %v23
    %26 = vst [vmem:[#allocation5 + $0x8] sm:$0xff] %v24
    // Predicated region
    $region10: #{tpu_custom_call.1} parent=1 // pred_check
      _
    $region11: #{tpu_custom_call.1} parent=1 // pred_check_branch
      %28 = sbr.rel (0) target = $region13
    $region12: #{tpu_custom_call.1} parent=1 // pred_region
      %s30 = ssub.s32 256, 256
      %31 = vsyncadd [#allocation4], %s30
      %s33 = sshll.u32 [#allocation5], 4
      %s34 = int_to_ptr.vmem [resolvable:$true] %s33
      %36 = dma.vmem_to_hbm [thread:$0]  %s34, 256, %s1, [#allocation4]
    $region13: #{tpu_custom_call.1} parent=1 // pred_fallthru
      _
    // Predicated region
    $region14: #{tpu_custom_call.1} parent=1 // pred_check
      _
    $region15: #{tpu_custom_call.1} parent=1 // pred_check_branch
      %38 = sbr.rel (0) target = $region17
    $region16: #{tpu_custom_call.1} parent=1 // pred_region
      %39 = dma.done [#allocation4], 256
    $region17: #{tpu_custom_call.1} parent=1 // pred_fallthru
      _
    %40 = vsyncpa [#allocation3], 1
    %41 = vsyncpa [#allocation4], 1

</llo_original>
